<compile_context>
chip_gen: v7x
topology: tpu7x:2x2x1
jax: 0.10.0
libtpu: 0.0.40
codegen_flags: <defaults>
</compile_context>

<pallas_src>
import numpy as np
import jax
import jax.numpy as jnp
from jax.experimental import pallas as pl
from jax.experimental.pallas import tpu as pltpu


def _round_up(x, m):
    return (x + m - 1) // m * m


def _cdiv(a, b):
    return (a + b - 1) // b


def _spike(x):
    # MultiSpike forward: round(clamp(x, 0, 4)) / 4  (round-half-even == torch.round)
    return jnp.round(jnp.clip(x, 0.0, 4.0)) * 0.25


def _fold_bn(w, b, gamma, beta, mean, var, eps):
    # Conv(W, b) followed by eval-mode BatchNorm -> (scale*W, scale*(b-mean)+beta)
    scale = gamma / jnp.sqrt(var + eps)
    return w * scale[:, None], scale * (b - mean) + beta


def _ms_mlp_kernel(x_ref, w1_ref, b1_ref, w2_ref, b2_ref, o_ref):
    # x_ref: (1, C, TN) f32 | w1: (hid, C) bf16 | b1: (hid, 1) f32
    # w2: (out, hid) bf16   | b2: (out, 1) f32  | o_ref: (1, out, TN)
    x = x_ref[0]
    s1 = _spike(x).astype(jnp.bfloat16)            # exact: values in {0,.25,.5,.75,1}
    h = jnp.dot(w1_ref[...], s1, preferred_element_type=jnp.float32)
    h = h + b1_ref[...]                            # folded conv-bias + BatchNorm1d
    s2 = _spike(h).astype(jnp.bfloat16)
    y = jnp.dot(w2_ref[...], s2, preferred_element_type=jnp.float32)
    y = y + b2_ref[...]
    o_ref[0] = y.astype(o_ref.dtype)


def _pick_tile_n(N, C, hidden, out, budget_bytes):
    """Largest 128-multiple lane tile whose working set fits the VMEM budget."""
    per_lane = (
        2 * C * 4          # input tile, f32, double-buffered
        + 2 * out * 4      # output tile, f32, double-buffered (upper bound)
        + C * 2            # s1 bf16
        + hidden * 6       # h f32 + s2 bf16
        + out * 4          # y f32
    )
    max_lanes = budget_bytes // max(per_lane, 1)
    tile = max(128, min(2048, max_lanes) // 128 * 128)
    tile = min(tile, _round_up(N, 128))
    return tile


def ms_mlp_forward(x, fc1_w, fc1_b, bn1_g, bn1_b, bn1_m, bn1_v,
                   fc2_w, fc2_b, bn2_g, bn2_b, bn2_m, bn2_v,
                   *, eps=1e-5, out_dtype=None,
                   vmem_budget_bytes=20 * 1024 * 1024,
                   vmem_limit_bytes=32 * 1024 * 1024):
    """x: (B, C, H, W) float32 -> (B, out_ch, H, W) (out_ch == C in MS_MLP)."""
    B, C, H, W = x.shape
    N = H * W
    hidden = fc1_w.shape[0]
    out = fc2_w.shape[0]
    out_dtype = out_dtype or x.dtype

    # Fold BatchNorm (running stats + affine) into the 1x1-conv weight/bias (exact).
    w1f, b1f = _fold_bn(fc1_w.reshape(hidden, C).astype(jnp.float32),
                        fc1_b, bn1_g, bn1_b, bn1_m, bn1_v, eps)
    w2f, b2f = _fold_bn(fc2_w.reshape(out, hidden).astype(jnp.float32),
                        fc2_b, bn2_g, bn2_b, bn2_m, bn2_v, eps)

    # Weights/biases: tiny, resident in VMEM; quantize weights once to bf16 (MXU operand).
    w1p = w1f.astype(jnp.bfloat16)
    b1p = b1f[:, None].astype(jnp.float32)
    w2p = w2f.astype(jnp.bfloat16)
    b2p = b2f[:, None].astype(jnp.float32)

    # Activation: reshape only (free, contiguous).  No pad / no slice on N:
    # the grid uses ragged last blocks; garbage in the OOB lanes is clamped by
    # spike and masked on the partial output store.
    xf = x.reshape(B, C, N).astype(jnp.float32)

    tile_n = _pick_tile_n(N, C, hidden, out, vmem_budget_bytes)
    n_tiles = _cdiv(N, tile_n)
    # Keep both v7x TensorCores busy: >= 2 parallel grid steps whenever possible.
    if B * n_tiles < 2 and tile_n > 128:
        tile_n = max(128, _round_up(_cdiv(N, 2), 128))
        n_tiles = _cdiv(N, tile_n)

    grid = (B, n_tiles)
    y = pl.pallas_call(
        _ms_mlp_kernel,
        out_shape=jax.ShapeDtypeStruct((B, out, N), out_dtype),
        grid_spec=pltpu.PrefetchScalarGridSpec(
            num_scalar_prefetch=0,
            grid=grid,
            in_specs=[
                pl.BlockSpec((1, C, tile_n), lambda b, j: (b, 0, j)),    # x tile
                pl.BlockSpec((hidden, C), lambda b, j: (0, 0)),          # W1 (resident)
                pl.BlockSpec((hidden, 1), lambda b, j: (0, 0)),          # bias1 (resident)
                pl.BlockSpec((out, hidden), lambda b, j: (0, 0)),        # W2 (resident)
                pl.BlockSpec((out, 1), lambda b, j: (0, 0)),             # bias2 (resident)
            ],
            out_specs=pl.BlockSpec((1, out, tile_n), lambda b, j: (b, 0, j)),
        ),
        compiler_params=pltpu.CompilerParams(
            dimension_semantics=("parallel", "parallel"),
            vmem_limit_bytes=vmem_limit_bytes),
    )(xf, w1p, b1p, w2p, b2p)

    return y.reshape(B, out, H, W)


def _reference(x, fc1_w, fc1_b, bn1_g, bn1_b, bn1_m, bn1_v,
               fc2_w, fc2_b, bn2_g, bn2_b, bn2_m, bn2_v, eps=1e-5):
    """Pure-JAX MS_MLP forward.  Uses the same folded-BN + bf16 weight
    quantization as the kernel (a deliberate MXU-operand choice), so the
    comparison isolates kernel correctness with a tight tolerance.  Versus the
    strict fp32 PyTorch module, ~1e-3-level deviation from weight quantization
    is expected; spike activations are exactly representable in bf16."""
    B, C, H, W = x.shape
    N = H * W
    hidden = fc1_w.shape[0]
    out = fc2_w.shape[0]
    w1f, b1f = _fold_bn(fc1_w.reshape(hidden, C).astype(jnp.float32),
                        fc1_b, bn1_g, bn1_b, bn1_m, bn1_v, eps)
    w2f, b2f = _fold_bn(fc2_w.reshape(out, hidden).astype(jnp.float32),
                        fc2_b, bn2_g, bn2_b, bn2_m, bn2_v, eps)
    w1q = w1f.astype(jnp.bfloat16).astype(jnp.float32)
    w2q = w2f.astype(jnp.bfloat16).astype(jnp.float32)
    xf = x.reshape(B, C, N).astype(jnp.float32)
    h = jnp.einsum('oc,bcn->bon', w1q, _spike(xf),
                   precision=jax.lax.Precision.HIGHEST) + b1f[None, :, None]
    y = jnp.einsum('oh,bhn->bon', w2q, _spike(h),
                   precision=jax.lax.Precision.HIGHEST) + b2f[None, :, None]
    return y.reshape(B, out, H, W)


def _make_params(key, C, HIDDEN):
    ks = jax.random.split(key, 12)
    fc1_w = 0.3 * jax.random.normal(ks[0], (HIDDEN, C, 1), jnp.float32)
    fc1_b = 0.1 * jax.random.normal(ks[1], (HIDDEN,), jnp.float32)
    bn1_g = 1.0 + 0.1 * jax.random.normal(ks[2], (HIDDEN,), jnp.float32)
    bn1_b = 0.5 + 0.2 * jax.random.normal(ks[3], (HIDDEN,), jnp.float32)
    bn1_m = 0.05 * jax.random.normal(ks[4], (HIDDEN,), jnp.float32)
    bn1_v = jnp.abs(1.0 + 0.1 * jax.random.normal(ks[5], (HIDDEN,), jnp.float32))
    fc2_w = 0.3 * jax.random.normal(ks[6], (C, HIDDEN, 1), jnp.float32)
    fc2_b = 0.1 * jax.random.normal(ks[7], (C,), jnp.float32)
    bn2_g = 1.0 + 0.1 * jax.random.normal(ks[8], (C,), jnp.float32)
    bn2_b = 0.1 * jax.random.normal(ks[9], (C,), jnp.float32)
    bn2_m = 0.05 * jax.random.normal(ks[10], (C,), jnp.float32)
    bn2_v = jnp.abs(1.0 + 0.1 * jax.random.normal(ks[11], (C,), jnp.float32))
    return (fc1_w, fc1_b, bn1_g, bn1_b, bn1_m, bn1_v,
            fc2_w, fc2_b, bn2_g, bn2_b, bn2_m, bn2_v)


if __name__ == "__main__":
    key = jax.random.PRNGKey(0)
    k_main, k_x1, k_x2 = jax.random.split(key, 3)

    # Case 1: N a multiple of the lane tile (clean blocks).
    B, C, H, W = 2, 32, 16, 16
    HIDDEN = 4 * C  # mlp_ratio = 4, as used by the SDTrack blocks
    params = _make_params(k_main, C, HIDDEN)
    x = jax.random.normal(k_x1, (B, C, H, W), jnp.float32) + 1.0
    out = jax.block_until_ready(ms_mlp_forward(x, *params))
    ref = jax.block_until_ready(_reference(x, *params))
    assert out.shape == (B, C, H, W)
    np.testing.assert_allclose(np.asarray(out), np.asarray(ref),
                               rtol=1e-4, atol=1e-4)

    # Case 2: ragged N (H*W not a multiple of 128) -> Pallas masked last block,
    # no wrapper-side padding or slicing.
    H2, W2 = 10, 10
    x2 = jax.random.normal(k_x2, (B, C, H2, W2), jnp.float32) + 1.0
    out2 = jax.block_until_ready(ms_mlp_forward(x2, *params))
    ref2 = jax.block_until_ready(_reference(x2, *params))
    assert out2.shape == (B, C, H2, W2)
    np.testing.assert_allclose(np.asarray(out2), np.asarray(ref2),
                               rtol=1e-4, atol=1e-4)

    print("KERNEL_OK")
</pallas_src>

<mosaic_0001>
module attributes {stable_mosaic.version = 11 : i64} {
  func.func @_ms_mlp_kernel(%arg0: i32, %arg1: i32, %arg2: memref<1x32x256xf32, #tpu.memory_space<vmem>>, %arg3: memref<128x32xbf16, #tpu.memory_space<vmem>>, %arg4: memref<128x1xf32, #tpu.memory_space<vmem>>, %arg5: memref<32x128xbf16, #tpu.memory_space<vmem>>, %arg6: memref<32x1xf32, #tpu.memory_space<vmem>>, %arg7: memref<1x32x256xf32, #tpu.memory_space<vmem>>) attributes {dimension_semantics = [#tpu.dimension_semantics<parallel>, #tpu.dimension_semantics<parallel>], iteration_bounds = array<i64: 2, 1>, scalar_prefetch = 0 : i64, scratch_operands = 0 : i64, tpu.core_type = #tpu.core_type<tc>, window_params = [{transform_indices = @transform_0, window_bounds = array<i64: 1, 32, 256>}, {pipeline_mode = #tpu.pipeline_mode<synchronous>, transform_indices = @transform_1, window_bounds = array<i64: 128, 32>}, {pipeline_mode = #tpu.pipeline_mode<synchronous>, transform_indices = @transform_2, window_bounds = array<i64: 128, 1>}, {pipeline_mode = #tpu.pipeline_mode<synchronous>, transform_indices = @transform_3, window_bounds = array<i64: 32, 128>}, {pipeline_mode = #tpu.pipeline_mode<synchronous>, transform_indices = @transform_4, window_bounds = array<i64: 32, 1>}, {transform_indices = @transform_5, window_bounds = array<i64: 1, 32, 256>}]} {
    %c0 = arith.constant 0 : index
    %c0_0 = arith.constant 0 : index
    %c0_1 = arith.constant 0 : index
    %0 = vector.load %arg2[%c0, %c0_0, %c0_1] : memref<1x32x256xf32, #tpu.memory_space<vmem>>, vector<1x32x256xf32>
    %1 = vector.shape_cast %0 : vector<1x32x256xf32> to vector<32x256xf32>
    %cst = arith.constant 0.000000e+00 : f32
    %cst_2 = arith.constant 4.000000e+00 : f32
    %2 = vector.broadcast %cst : f32 to vector<32x256xf32>
    %3 = arith.maximumf %2, %1 : vector<32x256xf32>
    %4 = vector.broadcast %cst_2 : f32 to vector<32x256xf32>
    %5 = arith.minimumf %4, %3 : vector<32x256xf32>
    %6 = math.roundeven %5 : vector<32x256xf32>
    %cst_3 = arith.constant 2.500000e-01 : f32
    %7 = vector.broadcast %cst_3 : f32 to vector<32x256xf32>
    %8 = arith.mulf %6, %7 : vector<32x256xf32>
    %9 = arith.truncf %8 : vector<32x256xf32> to vector<32x256xbf16>
    %c0_4 = arith.constant 0 : index
    %c0_5 = arith.constant 0 : index
    %10 = vector.load %arg3[%c0_4, %c0_5] : memref<128x32xbf16, #tpu.memory_space<vmem>>, vector<128x32xbf16>
    %cst_6 = arith.constant dense<0.000000e+00> : vector<128x256xf32>
    %11 = tpu.matmul %10, %9, %cst_6 {dimension_numbers = #tpu.dot_dimension_numbers<[1], [0], [0], [1], [0, 0, 1, 1], [], []>} : vector<128x32xbf16>, vector<32x256xbf16>, vector<128x256xf32> -> vector<128x256xf32>
    %c0_7 = arith.constant 0 : index
    %c0_8 = arith.constant 0 : index
    %12 = vector.load %arg4[%c0_7, %c0_8] : memref<128x1xf32, #tpu.memory_space<vmem>>, vector<128x1xf32>
    %13 = vector.broadcast %12 : vector<128x1xf32> to vector<128x256xf32>
    %14 = arith.addf %11, %13 : vector<128x256xf32>
    %cst_9 = arith.constant 0.000000e+00 : f32
    %cst_10 = arith.constant 4.000000e+00 : f32
    %15 = vector.broadcast %cst_9 : f32 to vector<128x256xf32>
    %16 = arith.maximumf %15, %14 : vector<128x256xf32>
    %17 = vector.broadcast %cst_10 : f32 to vector<128x256xf32>
    %18 = arith.minimumf %17, %16 : vector<128x256xf32>
    %19 = math.roundeven %18 : vector<128x256xf32>
    %cst_11 = arith.constant 2.500000e-01 : f32
    %20 = vector.broadcast %cst_11 : f32 to vector<128x256xf32>
    %21 = arith.mulf %19, %20 : vector<128x256xf32>
    %22 = arith.truncf %21 : vector<128x256xf32> to vector<128x256xbf16>
    %c0_12 = arith.constant 0 : index
    %c0_13 = arith.constant 0 : index
    %23 = vector.load %arg5[%c0_12, %c0_13] : memref<32x128xbf16, #tpu.memory_space<vmem>>, vector<32x128xbf16>
    %cst_14 = arith.constant dense<0.000000e+00> : vector<32x256xf32>
    %24 = tpu.matmul %23, %22, %cst_14 {dimension_numbers = #tpu.dot_dimension_numbers<[1], [0], [0], [1], [0, 0, 1, 1], [], []>} : vector<32x128xbf16>, vector<128x256xbf16>, vector<32x256xf32> -> vector<32x256xf32>
    %c0_15 = arith.constant 0 : index
    %c0_16 = arith.constant 0 : index
    %25 = vector.load %arg6[%c0_15, %c0_16] : memref<32x1xf32, #tpu.memory_space<vmem>>, vector<32x1xf32>
    %26 = vector.broadcast %25 : vector<32x1xf32> to vector<32x256xf32>
    %27 = arith.addf %24, %26 : vector<32x256xf32>
    %c0_17 = arith.constant 0 : index
    %c0_18 = arith.constant 0 : index
    %c0_19 = arith.constant 0 : index
    %28 = vector.load %arg7[%c0_17, %c0_18, %c0_19] : memref<1x32x256xf32, #tpu.memory_space<vmem>>, vector<1x32x256xf32>
    %29 = vector.shape_cast %28 : vector<1x32x256xf32> to vector<32x256xf32>
    %30 = vector.shape_cast %27 : vector<32x256xf32> to vector<1x32x256xf32>
    tpu.vector_store %arg7[%c0_17, %c0_18, %c0_19], %30 {strides = array<i32>} : memref<1x32x256xf32, #tpu.memory_space<vmem>>, vector<1x32x256xf32>,
    return
  }
  func.func @transform_0(%arg0: i32, %arg1: i32) -> (i32, i32, i32) {
    %c0_i32 = arith.constant 0 : i32
    %c0_i32_0 = arith.constant 0 : i32
    return %arg0, %c0_i32, %arg1 : i32, i32, i32
  }
  func.func @transform_1(%arg0: i32, %arg1: i32) -> (i32, i32) {
    %c0_i32 = arith.constant 0 : i32
    %c0_i32_0 = arith.constant 0 : i32
    %c0_i32_1 = arith.constant 0 : i32
    return %c0_i32, %c0_i32_0 : i32, i32
  }
  func.func @transform_2(%arg0: i32, %arg1: i32) -> (i32, i32) {
    %c0_i32 = arith.constant 0 : i32
    %c0_i32_0 = arith.constant 0 : i32
    %c0_i32_1 = arith.constant 0 : i32
    return %c0_i32, %c0_i32_0 : i32, i32
  }
  func.func @transform_3(%arg0: i32, %arg1: i32) -> (i32, i32) {
    %c0_i32 = arith.constant 0 : i32
    %c0_i32_0 = arith.constant 0 : i32
    %c0_i32_1 = arith.constant 0 : i32
    return %c0_i32, %c0_i32_0 : i32, i32
  }
  func.func @transform_4(%arg0: i32, %arg1: i32) -> (i32, i32) {
    %c0_i32 = arith.constant 0 : i32
    %c0_i32_0 = arith.constant 0 : i32
    %c0_i32_1 = arith.constant 0 : i32
    return %c0_i32, %c0_i32_0 : i32, i32
  }
  func.func @transform_5(%arg0: i32, %arg1: i32) -> (i32, i32, i32) {
    %c0_i32 = arith.constant 0 : i32
    %c0_i32_0 = arith.constant 0 : i32
    return %arg0, %c0_i32, %arg1 : i32, i32, i32
  }
}

</mosaic_0001>

<llo_original>
// kernel: tpu_custom_call.1
$region0: #{tpu_custom_call.1}
  #allocation0 [shape = 'u32[]', space=smem, size = 0x4, offset = 0x4, fixed_abs, tag = 'smem constant byte address 0x4 - core index']
  #allocation1 [shape = 'u32[144,128]{1,0:T(1,128)}', space=vmem, size = 0x12000, scoped, tag = 'internal scratch']
  %s0 = inlined_call_operand.vmem [shape: f32[2,32,256], index: 0, kind: input, shape index: {}]
  %s1 = inlined_call_operand.vmem [shape: bf16[128,32], index: 1, kind: input, shape index: {}]
  %s2 = inlined_call_operand.vmem [shape: f32[128,1], index: 2, kind: input, shape index: {}]
  %s3 = inlined_call_operand.vmem [shape: bf16[32,128], index: 3, kind: input, shape index: {}]
  %s4 = inlined_call_operand.vmem [shape: f32[32,1], index: 4, kind: input, shape index: {}]
  %s5 = inlined_call_operand.hbm [shape: f32[2,32,256], index: 5, kind: output, shape index: {}]
  %s6 = sld [smem:[#allocation0]]
  $region53: #{tpu_custom_call.1} parent=0
    _
  %s8 = ssub.s32 1, %s6
  %s9 = scalar_select 0, %s8, %s6
  $region1: #{tpu_custom_call.1} parent=0
    #allocation2 [shape = 'u8[65536]{0}', space=vmem, size = 0x10000, scoped, tag = 'output window, operand 0']
    #allocation3 [shape = 's32[2]{0}', space=sflag, size = 0x8, scoped, tag = 'scoped memory for tpu_custom_call.1']
    %10 = vsyncpa [#allocation3], 0
    %s11 = scalar_lea.sflag [#allocation3], 1
    %12 = vsyncpa %s11, 0
    loop: start=0, step=1, limit=4
    $region2: #{tpu_custom_call.1} parent=1 // loop_pre_header
      _
    $region3: #{tpu_custom_call.1} parent=1 // loop_header
      %s14 = sphi 0, %s18
      %p15 = scmp.ge.s32.totalorder %s14, 4
      %s21 = sphi 0, %s33
      %s22 = sphi 0, %s29
      %s23 = sphi 0, %s21
      %s24 = sphi 0, %s22
      %s25 = sphi 0, %s23
      %s26 = sphi 0, %s24
      %s38 = sphi 0, %s40
      %s41 = sphi 0, %s38
      %s42 = sphi 0, %s41
      %s58 = sphi 0, %s42
      %s62 = sphi 0, %s62
      %s64 = sphi 0, %s62
      %s65 = sphi 0, %s64
      %s79 = sphi 0, %s65
      %s83 = sphi 0, %s83
      %s85 = sphi 0, %s83
      %s86 = sphi 0, %s85
      %s100 = sphi 0, %s86
      %s104 = sphi 0, %s104
      %s106 = sphi 0, %s104
      %s107 = sphi 0, %s106
      %s121 = sphi 0, %s107
      %s125 = sphi 0, %s125
      %s127 = sphi 0, %s125
      %s128 = sphi 0, %s127
      %s142 = sphi 0, %s128
      %s150 = sphi 0, %s152
      %s153 = sphi 0, %s150
      %s154 = sphi 0, %s153
      %s170 = sphi 0, %s154
    $region4: #{tpu_custom_call.1} parent=1 // loop_header_branch
      %17 = sbr.rel (%p15) target = $region8
    $region5: #{tpu_custom_call.1} parent=1 // loop_body
      %s19 = ssub.s32 %s14, 1
      %s20 = ssub.s32 %s14, 2
      %s27 = sadd.s32 1, %s22
      %p28 = scmp.ge.s32.totalorder %s27, 1
      %s29 = scalar_select %p28, 0, %s27
      %s30 = sadd.s32 1, %s21
      %s31 = scalar_select %p28, %s30, %s21
      %p32 = scmp.ge.s32.totalorder %s31, 2
      %s33 = scalar_select %p32, 0, %s31
      %s34 = ssub.s32 %s21, %s33
      %s35 = ssub.s32 %s22, %s29
      %s36 = sor.u32 %s34, %s35
      %p37 = scmp.eq.s32.totalorder %s36, 0
      %s39 = sadd.s32 %s38, 1
      %s40 = scalar_select %p37, %s38, %s39
      %p43 = pneg %p37
      %p44 = scmp.eq.s32.totalorder %s14, 1
      %p45 = por %p43, %p44
      %p46 = scmp.ne.s32.totalorder %s38, %s41
      %p47 = scmp.eq.s32.totalorder %s14, 0
      %p48 = por %p46, %p47
      %p49 = scmp.ne.s32.totalorder %s38, %s41
      %p50 = scmp.eq.s32.totalorder %s19, 1
      %p51 = por %p49, %p50
      %p52 = scmp.ne.s32.totalorder %s41, %s42
      %p53 = scmp.eq.s32.totalorder %s19, 0
      %p54 = por %p52, %p53
      %p55 = scmp.ne.s32.totalorder %s41, %s42
      %p56 = scmp.eq.s32.totalorder %s20, 1
      %p57 = por %p55, %p56
      %p59 = scmp.ne.s32.totalorder %s42, %s58
      %p60 = scmp.eq.s32.totalorder %s20, 0
      %p61 = por %p59, %p60
      %s63 = sadd.s32 %s62, 1
      %p66 = scmp.eq.s32.totalorder %s14, 1
      %p67 = scmp.ne.s32.totalorder %s62, %s64
      %p68 = scmp.eq.s32.totalorder %s14, 0
      %p69 = por %p67, %p68
      %p70 = scmp.ne.s32.totalorder %s62, %s64
      %p71 = scmp.eq.s32.totalorder %s19, 1
      %p72 = por %p70, %p71
      %p73 = scmp.ne.s32.totalorder %s64, %s65
      %p74 = scmp.eq.s32.totalorder %s19, 0
      %p75 = por %p73, %p74
      %p76 = scmp.ne.s32.totalorder %s64, %s65
      %p77 = scmp.eq.s32.totalorder %s20, 1
      %p78 = por %p76, %p77
      %p80 = scmp.ne.s32.totalorder %s65, %s79
      %p81 = scmp.eq.s32.totalorder %s20, 0
      %p82 = por %p80, %p81
      %s84 = sadd.s32 %s83, 1
      %p87 = scmp.eq.s32.totalorder %s14, 1
      %p88 = scmp.ne.s32.totalorder %s83, %s85
      %p89 = scmp.eq.s32.totalorder %s14, 0
      %p90 = por %p88, %p89
      %p91 = scmp.ne.s32.totalorder %s83, %s85
      %p92 = scmp.eq.s32.totalorder %s19, 1
      %p93 = por %p91, %p92
      %p94 = scmp.ne.s32.totalorder %s85, %s86
      %p95 = scmp.eq.s32.totalorder %s19, 0
      %p96 = por %p94, %p95
      %p97 = scmp.ne.s32.totalorder %s85, %s86
      %p98 = scmp.eq.s32.totalorder %s20, 1
      %p99 = por %p97, %p98
      %p101 = scmp.ne.s32.totalorder %s86, %s100
      %p102 = scmp.eq.s32.totalorder %s20, 0
      %p103 = por %p101, %p102
      %s105 = sadd.s32 %s104, 1
      %p108 = scmp.eq.s32.totalorder %s14, 1
      %p109 = scmp.ne.s32.totalorder %s104, %s106
      %p110 = scmp.eq.s32.totalorder %s14, 0
      %p111 = por %p109, %p110
      %p112 = scmp.ne.s32.totalorder %s104, %s106
      %p113 = scmp.eq.s32.totalorder %s19, 1
      %p114 = por %p112, %p113
      %p115 = scmp.ne.s32.totalorder %s106, %s107
      %p116 = scmp.eq.s32.totalorder %s19, 0
      %p117 = por %p115, %p116
      %p118 = scmp.ne.s32.totalorder %s106, %s107
      %p119 = scmp.eq.s32.totalorder %s20, 1
      %p120 = por %p118, %p119
      %p122 = scmp.ne.s32.totalorder %s107, %s121
      %p123 = scmp.eq.s32.totalorder %s20, 0
      %p124 = por %p122, %p123
      %s126 = sadd.s32 %s125, 1
      %p129 = scmp.eq.s32.totalorder %s14, 1
      %p130 = scmp.ne.s32.totalorder %s125, %s127
      %p131 = scmp.eq.s32.totalorder %s14, 0
      %p132 = por %p130, %p131
      %p133 = scmp.ne.s32.totalorder %s125, %s127
      %p134 = scmp.eq.s32.totalorder %s19, 1
      %p135 = por %p133, %p134
      %p136 = scmp.ne.s32.totalorder %s127, %s128
      %p137 = scmp.eq.s32.totalorder %s19, 0
      %p138 = por %p136, %p137
      %p139 = scmp.ne.s32.totalorder %s127, %s128
      %p140 = scmp.eq.s32.totalorder %s20, 1
      %p141 = por %p139, %p140
      %p143 = scmp.ne.s32.totalorder %s128, %s142
      %p144 = scmp.eq.s32.totalorder %s20, 0
      %p145 = por %p143, %p144
      %s146 = ssub.s32 %s21, %s33
      %s147 = ssub.s32 %s22, %s29
      %s148 = sor.u32 %s146, %s147
      %p149 = scmp.eq.s32.totalorder %s148, 0
      %s151 = sadd.s32 %s150, 1
      %s152 = scalar_select %p149, %s150, %s151
      %p155 = pneg %p149
      %p156 = scmp.eq.s32.totalorder %s14, 1
      %p157 = por %p155, %p156
      %p158 = scmp.ne.s32.totalorder %s150, %s153
      %p159 = scmp.eq.s32.totalorder %s14, 0
      %p160 = por %p158, %p159
      %p161 = scmp.ne.s32.totalorder %s150, %s153
      %p162 = scmp.eq.s32.totalorder %s19, 1
      %p163 = por %p161, %p162
      %p164 = scmp.ne.s32.totalorder %s153, %s154
      %p165 = scmp.eq.s32.totalorder %s19, 0
      %p166 = por %p164, %p165
      %p167 = scmp.ne.s32.totalorder %s153, %s154
      %p168 = scmp.eq.s32.totalorder %s20, 1
      %p169 = por %p167, %p168
      %p171 = scmp.ne.s32.totalorder %s154, %s170
      %p172 = scmp.eq.s32.totalorder %s20, 0
      %p173 = por %p171, %p172
      %p174 = scmp.le.s32.totalorder 1, %s14
      %p175 = scmp.lt.s32.totalorder %s14, 3
      %p176 = pnand %p174, %p175
      %p177 = pneg %p176
      // Predicated region
      $region9: #{tpu_custom_call.1} parent=5 // pred_check
        _
      $region10: #{tpu_custom_call.1} parent=5 // pred_check_branch
        %179 = sbr.rel (%p176) target = $region12
      $region11: #{tpu_custom_call.1} parent=5 // pred_region
        %s180 = ssub.s32 %s14, 1
        // Predicated region
        $region13: #{tpu_custom_call.1} parent=11 // pred_check
          %p181 = pneg %p75
        $region14: #{tpu_custom_call.1} parent=11 // pred_check_branch
          %183 = sbr.rel (%p181) target = $region16
        $region15: #{tpu_custom_call.1} parent=11 // pred_region
          _
        $region16: #{tpu_custom_call.1} parent=11 // pred_fallthru
          _
        // Predicated region
        $region17: #{tpu_custom_call.1} parent=11 // pred_check
          %p184 = pneg %p96
        $region18: #{tpu_custom_call.1} parent=11 // pred_check_branch
          %186 = sbr.rel (%p184) target = $region20
        $region19: #{tpu_custom_call.1} parent=11 // pred_region
          _
        $region20: #{tpu_custom_call.1} parent=11 // pred_fallthru
          _
        // Predicated region
        $region21: #{tpu_custom_call.1} parent=11 // pred_check
          %p187 = pneg %p117
        $region22: #{tpu_custom_call.1} parent=11 // pred_check_branch
          %189 = sbr.rel (%p187) target = $region24
        $region23: #{tpu_custom_call.1} parent=11 // pred_region
          _
        $region24: #{tpu_custom_call.1} parent=11 // pred_fallthru
          _
        // Predicated region
        $region25: #{tpu_custom_call.1} parent=11 // pred_check
          %p190 = pneg %p138
        $region26: #{tpu_custom_call.1} parent=11 // pred_check_branch
          %192 = sbr.rel (%p190) target = $region28
        $region27: #{tpu_custom_call.1} parent=11 // pred_region
          _
        $region28: #{tpu_custom_call.1} parent=11 // pred_fallthru
          _
      $region12: #{tpu_custom_call.1} parent=5 // pred_fallthru
        _
      %p193 = scmp.lt.s32.totalorder %s14, 2
      // Predicated region
      $region29: #{tpu_custom_call.1} parent=5 // pred_check
        %p194 = pneg %p193
      $region30: #{tpu_custom_call.1} parent=5 // pred_check_branch
        %196 = sbr.rel (%p194) target = $region32
      $region31: #{tpu_custom_call.1} parent=5 // pred_region
        // Predicated region
        $region33: #{tpu_custom_call.1} parent=31 // pred_check
          %p197 = pneg %p48
        $region34: #{tpu_custom_call.1} parent=31 // pred_check_branch
          %199 = sbr.rel (%p197) target = $region36
        $region35: #{tpu_custom_call.1} parent=31 // pred_region
          %s200 = smul.u32 2, %s22
          %p201 = scmp.lt.s32.totalorder %s21, 1
          %s202 = scalar_select %p201, %s21, 1
          %p203 = scmp.lt.s32.totalorder %s200, 1
          %s204 = scalar_select %p203, %s200, 1
          %s205 = smul.addr %s202, 8
          %s206 = sadd.s32 %s204, %s205
          %s207 = smul.addr %s206, 8
          %s208 = scalar_lea.vmem %s0, %s207
          %s209 = smul.u32 2, %s22
        $region36: #{tpu_custom_call.1} parent=31 // pred_fallthru
          _
      $region32: #{tpu_custom_call.1} parent=5 // pred_fallthru
        _
      %p210 = scmp.le.s32.totalorder 1, %s14
      %p211 = scmp.lt.s32.totalorder %s14, 3
      %p212 = pnand %p210, %p211
      %p213 = pneg %p212
      // Predicated region
      $region37: #{tpu_custom_call.1} parent=5 // pred_check
        _
      $region38: #{tpu_custom_call.1} parent=5 // pred_check_branch
        %215 = sbr.rel (%p212) target = $region40
      $region39: #{tpu_custom_call.1} parent=5 // pred_region
        %s216 = ssub.s32 %s14, 1
        %s217 = smul.u32 2, %s24
        %p218 = scmp.lt.s32.totalorder %s23, 1
        %s219 = scalar_select %p218, %s23, 1
        %p220 = scmp.lt.s32.totalorder %s217, 1
        %s221 = scalar_select %p220, %s217, 1
        %s222 = smul.addr %s219, 8
        %s223 = sadd.s32 %s221, %s222
        %s224 = smul.addr %s223, 8
        %s225 = scalar_lea.vmem %s0, %s224
        %p226 = pneg %p54
        %p227 = pneg %p51
        %p228 = pneg %p75
        %p229 = pneg %p72
        %p230 = pneg %p96
        %p231 = pneg %p93
        %p232 = pneg %p117
        %p233 = pneg %p114
        %p234 = pneg %p138
        %p235 = pneg %p135
        %p236 = pneg %p166
        %p237 = pneg %p163
        %s238 = sand.u32 %s153, 1
        %s239 = scalar_lea.sflag [#allocation3], %s238
        %s240 = sand.u32 %s153, 1
        %s241 = smul.addr %s240, 64
        %s242 = scalar_lea.vmem [#allocation2], %s241
        %s243 = smul.u32 2, %s24
        %p244 = scmp.lt.s32.totalorder %s23, 1
        %s245 = scalar_select %p244, %s23, 1
        %p246 = scmp.lt.s32.totalorder %s243, 1
        %s247 = scalar_select %p246, %s243, 1
        %s248 = smul.addr %s245, 8
        %s249 = sadd.s32 %s247, %s248
        %s250 = smul.addr %s249, 8
        %s251 = scalar_lea.vmem %s0, %s250
        %s252 = smul.u32 2, %s24
        %s253 = smul.u32 2, %s24
        %v255 = vld [vmem:[%s251] sm:$0xff]
        %v256 = vld [vmem:[%s251 + $0x8] sm:$0xff]
        %v257 = vld [vmem:[%s251 + $0x10] sm:$0xff]
        %v258 = vld [vmem:[%s251 + $0x18] sm:$0xff]
        %v259 = vld [vmem:[%s251 + $0x20] sm:$0xff]
        %v260 = vld [vmem:[%s251 + $0x28] sm:$0xff]
        %v261 = vld [vmem:[%s251 + $0x30] sm:$0xff]
        %v262 = vld [vmem:[%s251 + $0x38] sm:$0xff]
        %v263 = vmax.f32 %v255, 0.0
        %v264 = vmax.f32 %v256, 0.0
        %v265 = vmax.f32 %v257, 0.0
        %v266 = vmax.f32 %v258, 0.0
        %v267 = vmax.f32 %v259, 0.0
        %v268 = vmax.f32 %v260, 0.0
        %v269 = vmax.f32 %v261, 0.0
        %v270 = vmax.f32 %v262, 0.0
        %v271 = vmin.f32 %v263, 4.0
        %v272 = vmin.f32 %v264, 4.0
        %v273 = vmin.f32 %v265, 4.0
        %v274 = vmin.f32 %v266, 4.0
        %v275 = vmin.f32 %v267, 4.0
        %v276 = vmin.f32 %v268, 4.0
        %v277 = vmin.f32 %v269, 4.0
        %v278 = vmin.f32 %v270, 4.0
        %v279 = vround.ne.pseudo %v271
        %v280 = vround.ne.pseudo %v272
        %v281 = vround.ne.pseudo %v273
        %v282 = vround.ne.pseudo %v274
        %v283 = vround.ne.pseudo %v275
        %v284 = vround.ne.pseudo %v276
        %v285 = vround.ne.pseudo %v277
        %v286 = vround.ne.pseudo %v278
        %v287 = vmul.f32 %v279, 0.25
        %v288 = vmul.f32 %v280, 0.25
        %v289 = vmul.f32 %v281, 0.25
        %v290 = vmul.f32 %v282, 0.25
        %v291 = vmul.f32 %v283, 0.25
        %v292 = vmul.f32 %v284, 0.25
        %v293 = vmul.f32 %v285, 0.25
        %v294 = vmul.f32 %v286, 0.25
        %v295 = vpack.c.bf16 %v289, %v287
        %v296 = vpack.c.bf16 %v290, %v288
        %v297 = vpack.c.bf16 %v293, %v291
        %v298 = vpack.c.bf16 %v294, %v292
        %v299 = vld [vmem:[%s1] sm:$0xf]
        %v300 = vld [vmem:[%s1 + $0x4] sm:$0xf]
        %v301 = vld [vmem:[%s1 + $0x8] sm:$0xf]
        %v302 = vld [vmem:[%s1 + $0xc] sm:$0xf]
        %v303 = vld [vmem:[%s1 + $0x10] sm:$0xf]
        %v304 = vld [vmem:[%s1 + $0x14] sm:$0xf]
        %v305 = vld [vmem:[%s1 + $0x18] sm:$0xf]
        %v306 = vld [vmem:[%s1 + $0x1c] sm:$0xf]
        %v307 = vld [vmem:[%s1 + $0x20] sm:$0xf]
        %v308 = vld [vmem:[%s1 + $0x24] sm:$0xf]
        %v309 = vld [vmem:[%s1 + $0x28] sm:$0xf]
        %v310 = vld [vmem:[%s1 + $0x2c] sm:$0xf]
        %v311 = vld [vmem:[%s1 + $0x30] sm:$0xf]
        %v312 = vld [vmem:[%s1 + $0x34] sm:$0xf]
        %v313 = vld [vmem:[%s1 + $0x38] sm:$0xf]
        %v314 = vld [vmem:[%s1 + $0x3c] sm:$0xf]
        %v315 = vld [vmem:[%s2] sm:$0xff]
        %v316 = vld [vmem:[%s2 + $0x8] sm:$0xff]
        %v317 = vld [vmem:[%s2 + $0x10] sm:$0xff]
        %v318 = vld [vmem:[%s2 + $0x18] sm:$0xff]
        %v319 = vld [vmem:[%s2 + $0x20] sm:$0xff]
        %v320 = vld [vmem:[%s2 + $0x28] sm:$0xff]
        %v321 = vld [vmem:[%s2 + $0x30] sm:$0xff]
        %v322 = vld [vmem:[%s2 + $0x38] sm:$0xff]
        %v323 = vld [vmem:[%s2 + $0x40] sm:$0xff]
        %v324 = vld [vmem:[%s2 + $0x48] sm:$0xff]
        %v325 = vld [vmem:[%s2 + $0x50] sm:$0xff]
        %v326 = vld [vmem:[%s2 + $0x58] sm:$0xff]
        %v327 = vld [vmem:[%s2 + $0x60] sm:$0xff]
        %v328 = vld [vmem:[%s2 + $0x68] sm:$0xff]
        %v329 = vld [vmem:[%s2 + $0x70] sm:$0xff]
        %v330 = vld [vmem:[%s2 + $0x78] sm:$0xff]
        %332 = vset.pattern.permute.xlu0 0
        %333 = vperm.xlu0 %332, %v315
        %v334 = vpop.permute.xlu0 %333
        %337 = vset.pattern.permute.xlu0 0
        %338 = vperm.xlu0 %337, %v316
        %v339 = vpop.permute.xlu0 %338
        %342 = vset.pattern.permute.xlu0 0
        %343 = vperm.xlu0 %342, %v317
        %v344 = vpop.permute.xlu0 %343
        %347 = vset.pattern.permute.xlu0 0
        %348 = vperm.xlu0 %347, %v318
        %v349 = vpop.permute.xlu0 %348
        %352 = vset.pattern.permute.xlu0 0
        %353 = vperm.xlu0 %352, %v319
        %v354 = vpop.permute.xlu0 %353
        %357 = vset.pattern.permute.xlu0 0
        %358 = vperm.xlu0 %357, %v320
        %v359 = vpop.permute.xlu0 %358
        %362 = vset.pattern.permute.xlu0 0
        %363 = vperm.xlu0 %362, %v321
        %v364 = vpop.permute.xlu0 %363
        %367 = vset.pattern.permute.xlu0 0
        %368 = vperm.xlu0 %367, %v322
        %v369 = vpop.permute.xlu0 %368
        %372 = vset.pattern.permute.xlu0 0
        %373 = vperm.xlu0 %372, %v323
        %v374 = vpop.permute.xlu0 %373
        %377 = vset.pattern.permute.xlu0 0
        %378 = vperm.xlu0 %377, %v324
        %v379 = vpop.permute.xlu0 %378
        %382 = vset.pattern.permute.xlu0 0
        %383 = vperm.xlu0 %382, %v325
        %v384 = vpop.permute.xlu0 %383
        %387 = vset.pattern.permute.xlu0 0
        %388 = vperm.xlu0 %387, %v326
        %v389 = vpop.permute.xlu0 %388
        %392 = vset.pattern.permute.xlu0 0
        %393 = vperm.xlu0 %392, %v327
        %v394 = vpop.permute.xlu0 %393
        %397 = vset.pattern.permute.xlu0 0
        %398 = vperm.xlu0 %397, %v328
        %v399 = vpop.permute.xlu0 %398
        %402 = vset.pattern.permute.xlu0 0
        %403 = vperm.xlu0 %402, %v329
        %v404 = vpop.permute.xlu0 %403
        %407 = vset.pattern.permute.xlu0 0
        %408 = vperm.xlu0 %407, %v330
        %v409 = vpop.permute.xlu0 %408
        %v427 = vunpack.c.l.b16 %v299
        %v428 = vunpack.c.l.b16 %v300
        %v429 = vunpack.c.l.b16 %v301
        %v430 = vunpack.c.l.b16 %v302
        %v431 = vunpack.c.l.b16 %v303
        %v432 = vunpack.c.l.b16 %v304
        %v433 = vunpack.c.l.b16 %v305
        %v434 = vunpack.c.l.b16 %v306
        %v435 = vunpack.c.l.b16 %v307
        %v436 = vunpack.c.l.b16 %v308
        %v437 = vunpack.c.l.b16 %v309
        %v438 = vunpack.c.l.b16 %v310
        %v439 = vunpack.c.l.b16 %v311
        %v440 = vunpack.c.l.b16 %v312
        %v441 = vunpack.c.l.b16 %v313
        %v442 = vunpack.c.l.b16 %v314
        %v443 = vpack.c.b16 %v428, %v427
        %v444 = vpack.c.b16 %v430, %v429
        %v445 = vpack.c.b16 %v432, %v431
        %v446 = vpack.c.b16 %v434, %v433
        %v447 = vpack.c.b16 %v436, %v435
        %v448 = vpack.c.b16 %v438, %v437
        %v449 = vpack.c.b16 %v440, %v439
        %v450 = vpack.c.b16 %v442, %v441
        %vm451 = vcmask 261120
        %v453 = vsel %vm451, %v443, 0
        %v456 = vsel %vm451, %v444, 0
        %v459 = vsel %vm451, %v445, 0
        %v462 = vsel %vm451, %v446, 0
        %v465 = vsel %vm451, %v447, 0
        %v468 = vsel %vm451, %v448, 0
        %v471 = vsel %vm451, %v449, 0
        %v474 = vsel %vm451, %v450, 0
        %476 = vmatprep.subr.bf16.mxu0 %v296
        %477 = vmatpush1.bf16.msra.mxu0 %v295
        %478 = vmatprep.subr.bf16.mxu0 %v298
        %479 = vmatpush1.bf16.msra.mxu0 %v297
        %480 = vmatprep.subr.bf16.mxu0 0
        %481 = vmatpush1.bf16.msra.mxu0 0
        %482 = vmatprep.subr.bf16.mxu0 0
        %483 = vmatpush1.bf16.msra.mxu0 0
        %484 = vmatprep.subr.bf16.mxu0 0
        %485 = vmatpush1.bf16.msra.mxu0 0
        %486 = vmatprep.subr.bf16.mxu0 0
        %487 = vmatpush1.bf16.msra.mxu0 0
        %488 = vmatprep.subr.bf16.mxu0 0
        %489 = vmatpush1.bf16.msra.mxu0 0
        %490 = vmatprep.subr.bf16.mxu0 0
        %491 = vmatpush1.bf16.msra.mxu0 0
        %492 = vmatprep.subr.bf16.mxu0 0
        %493 = vmatpush1.bf16.msra.mxu0 0
        %494 = vmatprep.subr.bf16.mxu0 0
        %495 = vmatpush1.bf16.msra.mxu0 0
        %496 = vmatprep.subr.bf16.mxu0 0
        %497 = vmatpush1.bf16.msra.mxu0 0
        %498 = vmatprep.subr.bf16.mxu0 0
        %499 = vmatpush1.bf16.msra.mxu0 0
        %500 = vmatprep.subr.bf16.mxu0 0
        %501 = vmatpush1.bf16.msra.mxu0 0
        %502 = vmatprep.subr.bf16.mxu0 0
        %503 = vmatpush1.bf16.msra.mxu0 0
        %504 = vmatprep.subr.bf16.mxu0 0
        %505 = vmatpush1.bf16.msra.mxu0 0
        %506 = vmatprep.subr.bf16.mxu0 0
        %507 = vmatpush1.bf16.msra.mxu0 0
        %508 = vmatprep.mubr.bf16.mxu0 0
        %509 = vmatmul.mubr.bf16.gmra.mrb[0].mxu0 %v453
        %v510 = vpop.f32.mrb[0].mxu0
        %v511 = vadd.f32 %v334, %v510
        %v512 = vpop.f32.mrb[0].mxu0
        %v513 = vadd.f32 %v334, %v512
        %v514 = vpop.f32.mrb[0].mxu0
        %v515 = vadd.f32 %v339, %v514
        %v516 = vpop.f32.mrb[0].mxu0
        %v517 = vadd.f32 %v339, %v516
        %518 = vmatprep.mubr.bf16.mxu0 0
        %519 = vmatmul.mubr.bf16.gmra.mrb[0].mxu0 %v456
        %v520 = vpop.f32.mrb[0].mxu0
        %v521 = vadd.f32 %v344, %v520
        %v522 = vpop.f32.mrb[0].mxu0
        %v523 = vadd.f32 %v344, %v522
        %v524 = vpop.f32.mrb[0].mxu0
        %v525 = vadd.f32 %v349, %v524
        %v526 = vpop.f32.mrb[0].mxu0
        %v527 = vadd.f32 %v349, %v526
        %528 = vmatprep.mubr.bf16.mxu0 0
        %529 = vmatmul.mubr.bf16.gmra.mrb[0].mxu0 %v459
        %v530 = vpop.f32.mrb[0].mxu0
        %v531 = vadd.f32 %v354, %v530
        %v532 = vpop.f32.mrb[0].mxu0
        %v533 = vadd.f32 %v354, %v532
        %v534 = vpop.f32.mrb[0].mxu0
        %v535 = vadd.f32 %v359, %v534
        %v536 = vpop.f32.mrb[0].mxu0
        %v537 = vadd.f32 %v359, %v536
        %538 = vmatprep.mubr.bf16.mxu0 0
        %539 = vmatmul.mubr.bf16.gmra.mrb[0].mxu0 %v462
        %v540 = vpop.f32.mrb[0].mxu0
        %v541 = vadd.f32 %v364, %v540
        %v542 = vpop.f32.mrb[0].mxu0
        %v543 = vadd.f32 %v364, %v542
        %v544 = vpop.f32.mrb[0].mxu0
        %v545 = vadd.f32 %v369, %v544
        %v546 = vpop.f32.mrb[0].mxu0
        %v547 = vadd.f32 %v369, %v546
        %548 = vmatprep.mubr.bf16.mxu0 0
        %549 = vmatmul.mubr.bf16.gmra.mrb[0].mxu0 %v465
        %v550 = vpop.f32.mrb[0].mxu0
        %v551 = vadd.f32 %v374, %v550
        %v552 = vpop.f32.mrb[0].mxu0
        %v553 = vadd.f32 %v374, %v552
        %v554 = vpop.f32.mrb[0].mxu0
        %v555 = vadd.f32 %v379, %v554
        %v556 = vpop.f32.mrb[0].mxu0
        %v557 = vadd.f32 %v379, %v556
        %558 = vmatprep.mubr.bf16.mxu0 0
        %559 = vmatmul.mubr.bf16.gmra.mrb[0].mxu0 %v468
        %v560 = vpop.f32.mrb[0].mxu0
        %v561 = vadd.f32 %v384, %v560
        %v562 = vpop.f32.mrb[0].mxu0
        %v563 = vadd.f32 %v384, %v562
        %v564 = vpop.f32.mrb[0].mxu0
        %v565 = vadd.f32 %v389, %v564
        %v566 = vpop.f32.mrb[0].mxu0
        %v567 = vadd.f32 %v389, %v566
        %568 = vmatprep.mubr.bf16.mxu0 0
        %569 = vmatmul.mubr.bf16.gmra.mrb[0].mxu0 %v471
        %v570 = vpop.f32.mrb[0].mxu0
        %v571 = vadd.f32 %v394, %v570
        %v572 = vpop.f32.mrb[0].mxu0
        %v573 = vadd.f32 %v394, %v572
        %v574 = vpop.f32.mrb[0].mxu0
        %v575 = vadd.f32 %v399, %v574
        %v576 = vpop.f32.mrb[0].mxu0
        %v577 = vadd.f32 %v399, %v576
        %578 = vmatprep.mubr.bf16.mxu0 0
        %579 = vmatmul.mubr.bf16.gmra.mrb[0].mxu0 %v474
        %v580 = vpop.f32.mrb[0].mxu0
        %v581 = vadd.f32 %v404, %v580
        %v582 = vpop.f32.mrb[0].mxu0
        %v583 = vadd.f32 %v404, %v582
        %v584 = vpop.f32.mrb[0].mxu0
        %v585 = vadd.f32 %v409, %v584
        %v586 = vpop.f32.mrb[0].mxu0
        %v587 = vadd.f32 %v409, %v586
        %588 = vdwg.mxu0
        %v589 = vmax.f32 %v511, 0.0
        %v590 = vmax.f32 %v513, 0.0
        %v591 = vmax.f32 %v515, 0.0
        %v592 = vmax.f32 %v517, 0.0
        %v593 = vmax.f32 %v521, 0.0
        %v594 = vmax.f32 %v523, 0.0
        %v595 = vmax.f32 %v525, 0.0
        %v596 = vmax.f32 %v527, 0.0
        %v597 = vmax.f32 %v531, 0.0
        %v598 = vmax.f32 %v533, 0.0
        %v599 = vmax.f32 %v535, 0.0
        %v600 = vmax.f32 %v537, 0.0
        %v601 = vmax.f32 %v541, 0.0
        %v602 = vmax.f32 %v543, 0.0
        %v603 = vmax.f32 %v545, 0.0
        %v604 = vmax.f32 %v547, 0.0
        %v605 = vmax.f32 %v551, 0.0
        %v606 = vmax.f32 %v553, 0.0
        %v607 = vmax.f32 %v555, 0.0
        %v608 = vmax.f32 %v557, 0.0
        %v609 = vmax.f32 %v561, 0.0
        %v610 = vmax.f32 %v563, 0.0
        %v611 = vmax.f32 %v565, 0.0
        %v612 = vmax.f32 %v567, 0.0
        %v613 = vmax.f32 %v571, 0.0
        %v614 = vmax.f32 %v573, 0.0
        %v615 = vmax.f32 %v575, 0.0
        %v616 = vmax.f32 %v577, 0.0
        %v617 = vmax.f32 %v581, 0.0
        %v618 = vmax.f32 %v583, 0.0
        %v619 = vmax.f32 %v585, 0.0
        %v620 = vmax.f32 %v587, 0.0
        %v621 = vmin.f32 %v589, 4.0
        %v622 = vmin.f32 %v590, 4.0
        %v623 = vmin.f32 %v591, 4.0
        %v624 = vmin.f32 %v592, 4.0
        %v625 = vmin.f32 %v593, 4.0
        %v626 = vmin.f32 %v594, 4.0
        %v627 = vmin.f32 %v595, 4.0
        %v628 = vmin.f32 %v596, 4.0
        %v629 = vmin.f32 %v597, 4.0
        %v630 = vmin.f32 %v598, 4.0
        %v631 = vmin.f32 %v599, 4.0
        %v632 = vmin.f32 %v600, 4.0
        %v633 = vmin.f32 %v601, 4.0
        %v634 = vmin.f32 %v602, 4.0
        %v635 = vmin.f32 %v603, 4.0
        %v636 = vmin.f32 %v604, 4.0
        %v637 = vmin.f32 %v605, 4.0
        %v638 = vmin.f32 %v606, 4.0
        %v639 = vmin.f32 %v607, 4.0
        %v640 = vmin.f32 %v608, 4.0
        %v641 = vmin.f32 %v609, 4.0
        %v642 = vmin.f32 %v610, 4.0
        %v643 = vmin.f32 %v611, 4.0
        %v644 = vmin.f32 %v612, 4.0
        %v645 = vmin.f32 %v613, 4.0
        %v646 = vmin.f32 %v614, 4.0
        %v647 = vmin.f32 %v615, 4.0
        %v648 = vmin.f32 %v616, 4.0
        %v649 = vmin.f32 %v617, 4.0
        %v650 = vmin.f32 %v618, 4.0
        %v651 = vmin.f32 %v619, 4.0
        %v652 = vmin.f32 %v620, 4.0
        %v653 = vround.ne.pseudo %v621
        %v654 = vround.ne.pseudo %v622
        %v655 = vround.ne.pseudo %v623
        %v656 = vround.ne.pseudo %v624
        %v657 = vround.ne.pseudo %v625
        %v658 = vround.ne.pseudo %v626
        %v659 = vround.ne.pseudo %v627
        %v660 = vround.ne.pseudo %v628
        %v661 = vround.ne.pseudo %v629
        %v662 = vround.ne.pseudo %v630
        %v663 = vround.ne.pseudo %v631
        %v664 = vround.ne.pseudo %v632
        %v665 = vround.ne.pseudo %v633
        %v666 = vround.ne.pseudo %v634
        %v667 = vround.ne.pseudo %v635
        %v668 = vround.ne.pseudo %v636
        %v669 = vround.ne.pseudo %v637
        %v670 = vround.ne.pseudo %v638
        %v671 = vround.ne.pseudo %v639
        %v672 = vround.ne.pseudo %v640
        %v673 = vround.ne.pseudo %v641
        %v674 = vround.ne.pseudo %v642
        %v675 = vround.ne.pseudo %v643
        %v676 = vround.ne.pseudo %v644
        %v677 = vround.ne.pseudo %v645
        %v678 = vround.ne.pseudo %v646
        %v679 = vround.ne.pseudo %v647
        %v680 = vround.ne.pseudo %v648
        %v681 = vround.ne.pseudo %v649
        %v682 = vround.ne.pseudo %v650
        %v683 = vround.ne.pseudo %v651
        %v684 = vround.ne.pseudo %v652
        %v685 = vmul.f32 %v653, 0.25
        %v686 = vmul.f32 %v654, 0.25
        %v687 = vmul.f32 %v655, 0.25
        %v688 = vmul.f32 %v656, 0.25
        %v689 = vmul.f32 %v657, 0.25
        %v690 = vmul.f32 %v658, 0.25
        %v691 = vmul.f32 %v659, 0.25
        %v692 = vmul.f32 %v660, 0.25
        %v693 = vmul.f32 %v661, 0.25
        %v694 = vmul.f32 %v662, 0.25
        %v695 = vmul.f32 %v663, 0.25
        %v696 = vmul.f32 %v664, 0.25
        %v697 = vmul.f32 %v665, 0.25
        %v698 = vmul.f32 %v666, 0.25
        %v699 = vmul.f32 %v667, 0.25
        %v700 = vmul.f32 %v668, 0.25
        %v701 = vmul.f32 %v669, 0.25
        %v702 = vmul.f32 %v670, 0.25
        %v703 = vmul.f32 %v671, 0.25
        %v704 = vmul.f32 %v672, 0.25
        %v705 = vmul.f32 %v673, 0.25
        %v706 = vmul.f32 %v674, 0.25
        %v707 = vmul.f32 %v675, 0.25
        %v708 = vmul.f32 %v676, 0.25
        %v709 = vmul.f32 %v677, 0.25
        %v710 = vmul.f32 %v678, 0.25
        %v711 = vmul.f32 %v679, 0.25
        %v712 = vmul.f32 %v680, 0.25
        %v713 = vmul.f32 %v681, 0.25
        %v714 = vmul.f32 %v682, 0.25
        %v715 = vmul.f32 %v683, 0.25
        %v716 = vmul.f32 %v684, 0.25
        %v717 = vpack.c.bf16 %v687, %v685
        %v718 = vpack.c.bf16 %v688, %v686
        %v719 = vpack.c.bf16 %v691, %v689
        %v720 = vpack.c.bf16 %v692, %v690
        %v721 = vpack.c.bf16 %v695, %v693
        %v722 = vpack.c.bf16 %v696, %v694
        %v723 = vpack.c.bf16 %v699, %v697
        %v724 = vpack.c.bf16 %v700, %v698
        %v725 = vpack.c.bf16 %v703, %v701
        %v726 = vpack.c.bf16 %v704, %v702
        %v727 = vpack.c.bf16 %v707, %v705
        %v728 = vpack.c.bf16 %v708, %v706
        %v729 = vpack.c.bf16 %v711, %v709
        %v730 = vpack.c.bf16 %v712, %v710
        %v731 = vpack.c.bf16 %v715, %v713
        %v732 = vpack.c.bf16 %v716, %v714
        %v733 = vld [vmem:[%s3] sm:$0xf]
        %v734 = vld [vmem:[%s3 + $0x4] sm:$0xf]
        %v735 = vld [vmem:[%s3 + $0x8] sm:$0xf]
        %v736 = vld [vmem:[%s3 + $0xc] sm:$0xf]
        %v737 = vld [vmem:[%s4] sm:$0xff]
        %v738 = vld [vmem:[%s4 + $0x8] sm:$0xff]
        %v739 = vld [vmem:[%s4 + $0x10] sm:$0xff]
        %v740 = vld [vmem:[%s4 + $0x18] sm:$0xff]
        %742 = vset.pattern.permute.xlu0 0
        %743 = vperm.xlu0 %742, %v737
        %v744 = vpop.permute.xlu0 %743
        %747 = vset.pattern.permute.xlu0 0
        %748 = vperm.xlu0 %747, %v738
        %v749 = vpop.permute.xlu0 %748
        %752 = vset.pattern.permute.xlu0 0
        %753 = vperm.xlu0 %752, %v739
        %v754 = vpop.permute.xlu0 %753
        %757 = vset.pattern.permute.xlu0 0
        %758 = vperm.xlu0 %757, %v740
        %v759 = vpop.permute.xlu0 %758
        %v765 = vunpack.c.l.b16 %v733
        %v766 = vunpack.c.l.b16 %v734
        %v767 = vunpack.c.l.b16 %v735
        %v768 = vunpack.c.l.b16 %v736
        %v769 = vpack.c.b16 %v766, %v765
        %v770 = vpack.c.b16 %v768, %v767
        %773 = vmatprep.subr.bf16.mxu0 %v718
        %774 = vmatpush1.bf16.msra.mxu0 %v717
        %775 = vmatprep.subr.bf16.mxu0 %v720
        %776 = vmatpush1.bf16.msra.mxu0 %v719
        %777 = vmatprep.subr.bf16.mxu0 %v722
        %778 = vmatpush1.bf16.msra.mxu0 %v721
        %779 = vmatprep.subr.bf16.mxu0 %v724
        %780 = vmatpush1.bf16.msra.mxu0 %v723
        %781 = vmatprep.subr.bf16.mxu0 %v726
        %782 = vmatpush1.bf16.msra.mxu0 %v725
        %783 = vmatprep.subr.bf16.mxu0 %v728
        %784 = vmatpush1.bf16.msra.mxu0 %v727
        %785 = vmatprep.subr.bf16.mxu0 %v730
        %786 = vmatpush1.bf16.msra.mxu0 %v729
        %787 = vmatprep.subr.bf16.mxu0 %v732
        %788 = vmatpush1.bf16.msra.mxu0 %v731
        %789 = vmatprep.subr.bf16.mxu0 0
        %790 = vmatpush1.bf16.msra.mxu0 0
        %791 = vmatprep.subr.bf16.mxu0 0
        %792 = vmatpush1.bf16.msra.mxu0 0
        %793 = vmatprep.subr.bf16.mxu0 0
        %794 = vmatpush1.bf16.msra.mxu0 0
        %795 = vmatprep.subr.bf16.mxu0 0
        %796 = vmatpush1.bf16.msra.mxu0 0
        %797 = vmatprep.subr.bf16.mxu0 0
        %798 = vmatpush1.bf16.msra.mxu0 0
        %799 = vmatprep.subr.bf16.mxu0 0
        %800 = vmatpush1.bf16.msra.mxu0 0
        %801 = vmatprep.subr.bf16.mxu0 0
        %802 = vmatpush1.bf16.msra.mxu0 0
        %803 = vmatprep.subr.bf16.mxu0 0
        %804 = vmatpush1.bf16.msra.mxu0 0
        %805 = vmatprep.mubr.bf16.mxu0 0
        %806 = vmatmul.mubr.bf16.gmra.mrb[0].mxu0 %v769
        %v807 = vpop.f32.mrb[0].mxu0
        %v808 = vadd.f32 %v744, %v807
        %v809 = vpop.f32.mrb[0].mxu0
        %v810 = vadd.f32 %v744, %v809
        %v811 = vpop.f32.mrb[0].mxu0
        %v812 = vadd.f32 %v749, %v811
        %v813 = vpop.f32.mrb[0].mxu0
        %v814 = vadd.f32 %v749, %v813
        %815 = vmatprep.mubr.bf16.mxu0 0
        %816 = vmatmul.mubr.bf16.gmra.mrb[0].mxu0 %v770
        %v817 = vpop.f32.mrb[0].mxu0
        %v818 = vadd.f32 %v754, %v817
        %v819 = vpop.f32.mrb[0].mxu0
        %v820 = vadd.f32 %v754, %v819
        %v821 = vpop.f32.mrb[0].mxu0
        %v822 = vadd.f32 %v759, %v821
        %v823 = vpop.f32.mrb[0].mxu0
        %v824 = vadd.f32 %v759, %v823
        %825 = vdwg.mxu0
        %826 = vst [vmem:[%s242] sm:$0xff] %v808
        %827 = vst [vmem:[%s242 + $0x8] sm:$0xff] %v810
        %828 = vst [vmem:[%s242 + $0x10] sm:$0xff] %v812
        %829 = vst [vmem:[%s242 + $0x18] sm:$0xff] %v814
        %830 = vst [vmem:[%s242 + $0x20] sm:$0xff] %v818
        %831 = vst [vmem:[%s242 + $0x28] sm:$0xff] %v820
        %832 = vst [vmem:[%s242 + $0x30] sm:$0xff] %v822
        %833 = vst [vmem:[%s242 + $0x38] sm:$0xff] %v824
        %s834 = sand.u32 %s153, 1
        %s835 = scalar_lea.sflag [#allocation3], %s834
        %s836 = sand.u32 %s153, 1
        %s837 = smul.addr %s836, 64
        %s838 = scalar_lea.vmem [#allocation2], %s837
        // Predicated region
        $region41: #{tpu_custom_call.1} parent=39 // pred_check
          %p839 = pneg %p163
        $region42: #{tpu_custom_call.1} parent=39 // pred_check_branch
          %841 = sbr.rel (%p839) target = $region44
        $region43: #{tpu_custom_call.1} parent=39 // pred_region
          %s842 = smul.u32 2, %s24
          %s844 = ssub.s32 1024, 1024
          %845 = vsyncadd %s835, %s844
          %s846 = smul.addr %s23, 8
          %s847 = sadd.s32 %s842, %s846
          %s848 = smul.addr %s847, 128
          %s849 = scalar_lea.hbm %s5, %s848
          %s850 = sshll.u32 %s838, 4
          %s851 = int_to_ptr.vmem [resolvable:$true] %s850
          %856 = dma.vmem_to_hbm [thread:$0]  %s851, 1024, %s849, %s835, 256, 256, 16
        $region44: #{tpu_custom_call.1} parent=39 // pred_fallthru
          _
      $region40: #{tpu_custom_call.1} parent=5 // pred_fallthru
        _
      %p857 = scmp.le.s32.totalorder 2, %s14
      // Predicated region
      $region45: #{tpu_custom_call.1} parent=5 // pred_check
        %p858 = pneg %p857
      $region46: #{tpu_custom_call.1} parent=5 // pred_check_branch
        %860 = sbr.rel (%p858) target = $region48
      $region47: #{tpu_custom_call.1} parent=5 // pred_region
        %s861 = ssub.s32 %s14, 2
        // Predicated region
        $region49: #{tpu_custom_call.1} parent=47 // pred_check
          %p862 = pneg %p169
        $region50: #{tpu_custom_call.1} parent=47 // pred_check_branch
          %864 = sbr.rel (%p862) target = $region52
        $region51: #{tpu_custom_call.1} parent=47 // pred_region
          %s865 = sand.u32 %s154, 1
          %s866 = scalar_lea.sflag [#allocation3], %s865
          %s867 = sand.u32 %s154, 1
          %s868 = smul.addr %s867, 64
          %s869 = scalar_lea.vmem [#allocation2], %s868
          %870 = dma.done %s866, 1024
        $region52: #{tpu_custom_call.1} parent=47 // pred_fallthru
          _
      $region48: #{tpu_custom_call.1} parent=5 // pred_fallthru
        _
    $region6: #{tpu_custom_call.1} parent=1 // loop_footer
      %s18 = sadd.s32 1, %s14
    $region7: #{tpu_custom_call.1} parent=1 // loop_footer_branch
      %13 = sbr.rel target = $region3
    $region8: #{tpu_custom_call.1} parent=1 // loop_exit
      _
    %871 = vsyncpa [#allocation3], 1
    %s872 = scalar_lea.sflag [#allocation3], 1
    %873 = vsyncpa %s872, 1

</llo_original>
